<compile_context>
chip_gen: v5e
topology: v5e:2x2
jax: 0.10.0
libtpu: 0.0.40
codegen_flags: <defaults>
</compile_context>

<pallas_src>
import functools

import jax
import jax.numpy as jnp
from jax.experimental import pallas as pl
from jax.experimental.pallas import tpu as pltpu


def _round_up(x: int, m: int) -> int:
    return ((x + m - 1) // m) * m


def _margin_loss_kernel(margin_ref, score_ref, neg_ref, out_ref, *,
                        n_rows: int, block_n: int, half_blocks: int):
    c = pl.program_id(0)          # which half (-> which TensorCore on v7x)
    i = pl.program_id(1)          # tile index within this half

    # The resident output block doubles as the per-half accumulator.
    @pl.when(i == 0)
    def _():
        out_ref[...] = jnp.zeros_like(out_ref)

    margin = margin_ref[0]        # f32 scalar read from SMEM

    s = score_ref[...].astype(jnp.float32)    # (block_n, d_s)
    n = neg_ref[...].astype(jnp.float32)      # (block_n, d_n)

    # L2 norms over the last (lane) axis.
    norm_s = jnp.sqrt(jnp.sum(s * s, axis=-1, keepdims=True))   # (block_n, 1)
    norm_n = jnp.sqrt(jnp.sum(n * n, axis=-1, keepdims=True))   # (block_n, 1)
    hinge = jnp.maximum(norm_s - norm_n + margin, 0.0)           # (block_n, 1)

    # Row offset from the UNCLAMPED program ids (the DMA block index may have
    # been clamped to the last valid block; the mask below handles that).
    row0 = (c * half_blocks + i) * block_n

    @pl.when(row0 + block_n <= n_rows)
    def _():
        # Full, fully in-range tile: no mask math needed.
        out_ref[...] += jnp.sum(hinge, keepdims=True)

    @pl.when(row0 + block_n > n_rows)
    def _():
        # Ragged final tile or fully over-run tile: zero out rows >= n_rows
        # (their data is stale/garbage from the clamped / partial DMA block;
        # jnp.where's select semantics make even NaN content safe).
        row_ids = row0 + jax.lax.broadcasted_iota(jnp.int32, (block_n, 1), 0)
        masked = jnp.where(row_ids < n_rows, hinge, 0.0)
        out_ref[...] += jnp.sum(masked, keepdims=True)


def margin_loss(score: jax.Array, neg_score: jax.Array,
                margin: float = 1.0, *, _block_rows: int | None = None
                ) -> jax.Array:
    """Pallas implementation of MarginLoss.forward. Returns a scalar f32.

    Feed bf16 inputs when possible: the kernel upcasts in-vreg, and halving
    the HBM traffic ~halves the runtime of this bandwidth-bound reduction.
    `_block_rows` is a test-only override of the tile row count.
    """
    # Glue: collapse all leading dims (torch.norm(..., 2, -1).flatten()).
    d_s = score.shape[-1]
    d_n = neg_score.shape[-1]
    score2 = score.reshape(-1, d_s)
    neg2 = neg_score.reshape(-1, d_n)
    n_rows = score2.shape[0]
    assert neg2.shape[0] == n_rows, (
        "flattened score / neg_score must have the same number of rows")

    # Tile rows: sized from VMEM bytes (lane-padded D, f32-equivalent so the
    # in-kernel upcast of bf16 inputs is accounted for), ~4 MiB per input per
    # grid step, multiple of 8 sublanes, never larger than the (rounded) input.
    d_pad = max(_round_up(d_s, 128), _round_up(d_n, 128))
    target_tile_bytes = 4 * 1024 * 1024
    block_n = target_tile_bytes // (d_pad * 4)
    block_n = max(8, (block_n // 8) * 8)
    block_n = min(block_n, max(8, _round_up(n_rows, 8)))
    if _block_rows is not None:
        block_n = max(8, (_block_rows // 8) * 8)

    num_blocks = -(-n_rows // block_n)
    num_halves = 2 if num_blocks >= 2 else 1   # 2-way split only if useful
    half_blocks = -(-num_blocks // num_halves)
    last_block = num_blocks - 1

    # Clamp the DMA block index to the last valid block; the kernel's row mask
    # (computed from the unclamped ids) zeroes any over-run / ragged rows.
    def in_map(c, i):
        return (jnp.minimum(c * half_blocks + i, last_block), 0)

    margin_arr = jnp.asarray([margin], dtype=jnp.float32)

    kernel = functools.partial(_margin_loss_kernel, n_rows=n_rows,
                               block_n=block_n, half_blocks=half_blocks)

    out = pl.pallas_call(
        kernel,
        out_shape=jax.ShapeDtypeStruct((num_halves * 8, 128), jnp.float32),
        grid=(num_halves, half_blocks),
        in_specs=[
            pl.BlockSpec(memory_space=pltpu.MemorySpace.SMEM),   # margin (1,)
            pl.BlockSpec((block_n, d_s), in_map),
            pl.BlockSpec((block_n, d_n), in_map),
        ],
        out_specs=pl.BlockSpec((8, 128), lambda c, i: (c, 0)),
        compiler_params=pltpu.CompilerParams(
            dimension_semantics=("parallel", "arbitrary"),
            vmem_limit_bytes=32 * 1024 * 1024),
    )(margin_arr, score2, neg2)

    # Combine the per-half partial sums and divide by the true N.
    partials = out[0::8, 0]                    # (num_halves,)
    return jnp.sum(partials) / jnp.float32(n_rows)


def _reference(score, neg_score, margin=1.0):
    s = jnp.linalg.norm(score.astype(jnp.float32), axis=-1).reshape(-1)
    n = jnp.linalg.norm(neg_score.astype(jnp.float32), axis=-1).reshape(-1)
    return jnp.mean(jnp.maximum(s - n + margin, 0.0))


if __name__ == "__main__":
    key = jax.random.PRNGKey(0)
    k1, k2, k3, k4, k5, k6 = jax.random.split(key, 6)

    # Case 1: simple batch of embedding vectors, exact tile fit.
    score = jax.random.normal(k1, (8, 32), dtype=jnp.float32)
    neg_score = jax.random.normal(k2, (8, 32), dtype=jnp.float32)
    out1 = jax.block_until_ready(margin_loss(score, neg_score, margin=1.0))
    ref1 = _reference(score, neg_score, margin=1.0)
    assert jnp.allclose(out1, ref1, atol=1e-5, rtol=1e-5), (out1, ref1)

    # Case 2: leading dims that get flattened + row count not a multiple of 8
    # (exercises the ragged final block with no wrapper padding) + margin.
    score_b = jax.random.normal(k3, (3, 13, 64), dtype=jnp.float32)
    neg_score_b = jax.random.normal(k4, (3, 13, 64), dtype=jnp.float32)
    out2 = jax.block_until_ready(margin_loss(score_b, neg_score_b, margin=0.5))
    ref2 = _reference(score_b, neg_score_b, margin=0.5)
    assert jnp.allclose(out2, ref2, atol=1e-5, rtol=1e-5), (out2, ref2)

    # Case 3: bf16 inputs, forced small tile -> odd num_blocks across the
    # 2-way split (exercises the clamped over-run tile + unclamped row mask).
    score_c = jax.random.normal(k5, (3, 13, 64), dtype=jnp.bfloat16)
    neg_score_c = jax.random.normal(k6, (3, 13, 64), dtype=jnp.bfloat16)
    out3 = jax.block_until_ready(
        margin_loss(score_c, neg_score_c, margin=1.0, _block_rows=16))
    ref3 = _reference(score_c, neg_score_c, margin=1.0)
    assert jnp.allclose(out3, ref3, atol=1e-4, rtol=1e-4), (out3, ref3)

    print("KERNEL_OK")
</pallas_src>

<mosaic_0001>
module attributes {stable_mosaic.version = 11 : i64} {
  func.func @_margin_loss_kernel(%arg0: i32, %arg1: i32, %arg2: memref<1xf32, #tpu.memory_space<smem>>, %arg3: memref<8x32xf32, #tpu.memory_space<vmem>>, %arg4: memref<8x32xf32, #tpu.memory_space<vmem>>, %arg5: memref<8x128xf32, #tpu.memory_space<vmem>>) attributes {dimension_semantics = [#tpu.dimension_semantics<parallel>, #tpu.dimension_semantics<arbitrary>], iteration_bounds = array<i64: 1, 1>, scalar_prefetch = 0 : i64, scratch_operands = 0 : i64, tpu.core_type = #tpu.core_type<tc>, window_params = [{transform_indices = @transform_0, window_bounds = array<i64: 1>}, {transform_indices = @transform_1, window_bounds = array<i64: 8, 32>}, {transform_indices = @transform_2, window_bounds = array<i64: 8, 32>}, {transform_indices = @transform_3, window_bounds = array<i64: 8, 128>}]} {
    %c0_i32 = arith.constant 0 : i32
    %0 = arith.cmpi eq, %arg1, %c0_i32 : i32
    %1 = arith.extui %0 : i1 to i32
    %c0_i32_0 = arith.constant 0 : i32
    %2 = arith.cmpi ne, %1, %c0_i32_0 : i32
    scf.if %2 {
      %cst_13 = arith.constant 0.000000e+00 : f32
      %30 = vector.broadcast %cst_13 : f32 to vector<8x128xf32>
      %c0_14 = arith.constant 0 : index
      %c0_15 = arith.constant 0 : index
      %31 = vector.load %arg5[%c0_14, %c0_15] : memref<8x128xf32, #tpu.memory_space<vmem>>, vector<8x128xf32>
      tpu.vector_store %arg5[%c0_14, %c0_15], %30 {strides = array<i32>} : memref<8x128xf32, #tpu.memory_space<vmem>>, vector<8x128xf32>,
    } else {
    }
    %c0 = arith.constant 0 : index
    %3 = memref.load %arg2[%c0] : memref<1xf32, #tpu.memory_space<smem>>
    %c0_1 = arith.constant 0 : index
    %c0_2 = arith.constant 0 : index
    %4 = vector.load %arg3[%c0_1, %c0_2] : memref<8x32xf32, #tpu.memory_space<vmem>>, vector<8x32xf32>
    %c0_3 = arith.constant 0 : index
    %c0_4 = arith.constant 0 : index
    %5 = vector.load %arg4[%c0_3, %c0_4] : memref<8x32xf32, #tpu.memory_space<vmem>>, vector<8x32xf32>
    %6 = arith.mulf %4, %4 : vector<8x32xf32>
    %cst = arith.constant dense<0.000000e+00> : vector<8xf32>
    %7 = vector.multi_reduction <add>, %6, %cst [1] : vector<8x32xf32> to vector<8xf32>
    %8 = vector.shape_cast %7 : vector<8xf32> to vector<8x1xf32>
    %9 = math.sqrt %8 : vector<8x1xf32>
    %10 = arith.mulf %5, %5 : vector<8x32xf32>
    %cst_5 = arith.constant dense<0.000000e+00> : vector<8xf32>
    %11 = vector.multi_reduction <add>, %10, %cst_5 [1] : vector<8x32xf32> to vector<8xf32>
    %12 = vector.shape_cast %11 : vector<8xf32> to vector<8x1xf32>
    %13 = math.sqrt %12 : vector<8x1xf32>
    %14 = arith.subf %9, %13 : vector<8x1xf32>
    %15 = vector.broadcast %3 : f32 to vector<8x1xf32>
    %16 = arith.addf %14, %15 : vector<8x1xf32>
    %cst_6 = arith.constant 0.000000e+00 : f32
    %17 = vector.broadcast %cst_6 : f32 to vector<8x1xf32>
    %18 = arith.maximumf %16, %17 : vector<8x1xf32>
    %c1_i32 = arith.constant 1 : i32
    %19 = arith.muli %arg0, %c1_i32 : i32
    %20 = arith.addi %19, %arg1 : i32
    %c8_i32 = arith.constant 8 : i32
    %21 = arith.muli %20, %c8_i32 : i32
    %c8_i32_7 = arith.constant 8 : i32
    %22 = arith.addi %21, %c8_i32_7 : i32
    %c8_i32_8 = arith.constant 8 : i32
    %23 = arith.cmpi sle, %22, %c8_i32_8 : i32
    %24 = arith.extui %23 : i1 to i32
    %c0_i32_9 = arith.constant 0 : i32
    %25 = arith.cmpi ne, %24, %c0_i32_9 : i32
    scf.if %25 {
      %c0_13 = arith.constant 0 : index
      %c0_14 = arith.constant 0 : index
      %30 = vector.load %arg5[%c0_13, %c0_14] : memref<8x128xf32, #tpu.memory_space<vmem>>, vector<8x128xf32>
      %31 = vector.shape_cast %18 : vector<8x1xf32> to vector<1x8x1xf32>
      %cst_15 = arith.constant dense<0.000000e+00> : vector<1xf32>
      %32 = vector.multi_reduction <add>, %31, %cst_15 [1, 2] : vector<1x8x1xf32> to vector<1xf32>
      %33 = vector.shape_cast %32 : vector<1xf32> to vector<1x1x1xf32>
      %34 = vector.extract %33[0, 0, 0] : f32 from vector<1x1x1xf32>
      %35 = vector.broadcast %34 : f32 to vector<1x1xf32>
      %36 = vector.broadcast %35 : vector<1x1xf32> to vector<8x128xf32>
      %37 = arith.addf %30, %36 : vector<8x128xf32>
      %c0_16 = arith.constant 0 : index
      %c0_17 = arith.constant 0 : index
      %38 = vector.load %arg5[%c0_16, %c0_17] : memref<8x128xf32, #tpu.memory_space<vmem>>, vector<8x128xf32>
      tpu.vector_store %arg5[%c0_16, %c0_17], %37 {strides = array<i32>} : memref<8x128xf32, #tpu.memory_space<vmem>>, vector<8x128xf32>,
    } else {
    }
    %c8_i32_10 = arith.constant 8 : i32
    %26 = arith.addi %21, %c8_i32_10 : i32
    %c8_i32_11 = arith.constant 8 : i32
    %27 = arith.cmpi sgt, %26, %c8_i32_11 : i32
    %28 = arith.extui %27 : i1 to i32
    %c0_i32_12 = arith.constant 0 : i32
    %29 = arith.cmpi ne, %28, %c0_i32_12 : i32
    scf.if %29 {
      %30 = tpu.iota {dimensions = array<i32: 0>} : vector<8x1xi32>
      %31 = vector.broadcast %21 : i32 to vector<8x1xi32>
      %32 = arith.addi %31, %30 : vector<8x1xi32>
      %c8_i32_13 = arith.constant 8 : i32
      %33 = vector.broadcast %c8_i32_13 : i32 to vector<8x1xi32>
      %34 = arith.cmpi slt, %32, %33 : vector<8x1xi32>
      %cst_14 = arith.constant 0.000000e+00 : f32
      %35 = vector.broadcast %cst_14 : f32 to vector<8x1xf32>
      %36 = arith.select %34, %18, %35 : vector<8x1xi1>, vector<8x1xf32>
      %c0_15 = arith.constant 0 : index
      %c0_16 = arith.constant 0 : index
      %37 = vector.load %arg5[%c0_15, %c0_16] : memref<8x128xf32, #tpu.memory_space<vmem>>, vector<8x128xf32>
      %38 = vector.shape_cast %36 : vector<8x1xf32> to vector<1x8x1xf32>
      %cst_17 = arith.constant dense<0.000000e+00> : vector<1xf32>
      %39 = vector.multi_reduction <add>, %38, %cst_17 [1, 2] : vector<1x8x1xf32> to vector<1xf32>
      %40 = vector.shape_cast %39 : vector<1xf32> to vector<1x1x1xf32>
      %41 = vector.extract %40[0, 0, 0] : f32 from vector<1x1x1xf32>
      %42 = vector.broadcast %41 : f32 to vector<1x1xf32>
      %43 = vector.broadcast %42 : vector<1x1xf32> to vector<8x128xf32>
      %44 = arith.addf %37, %43 : vector<8x128xf32>
      %c0_18 = arith.constant 0 : index
      %c0_19 = arith.constant 0 : index
      %45 = vector.load %arg5[%c0_18, %c0_19] : memref<8x128xf32, #tpu.memory_space<vmem>>, vector<8x128xf32>
      tpu.vector_store %arg5[%c0_18, %c0_19], %44 {strides = array<i32>} : memref<8x128xf32, #tpu.memory_space<vmem>>, vector<8x128xf32>,
    } else {
    }
    return
  }
  func.func @transform_0(%arg0: i32, %arg1: i32) -> i32 {
    %c0_i32 = arith.constant 0 : i32
    %c0_i32_0 = arith.constant 0 : i32
    return %c0_i32 : i32
  }
  func.func @transform_1(%arg0: i32, %arg1: i32) -> (i32, i32) {
    %c1_i32 = arith.constant 1 : i32
    %0 = arith.muli %arg0, %c1_i32 : i32
    %1 = arith.addi %0, %arg1 : i32
    %c0_i32 = arith.constant 0 : i32
    %2 = arith.minsi %1, %c0_i32 : i32
    %c0_i32_0 = arith.constant 0 : i32
    %c0_i32_1 = arith.constant 0 : i32
    return %2, %c0_i32_0 : i32, i32
  }
  func.func @transform_2(%arg0: i32, %arg1: i32) -> (i32, i32) {
    %c1_i32 = arith.constant 1 : i32
    %0 = arith.muli %arg0, %c1_i32 : i32
    %1 = arith.addi %0, %arg1 : i32
    %c0_i32 = arith.constant 0 : i32
    %2 = arith.minsi %1, %c0_i32 : i32
    %c0_i32_0 = arith.constant 0 : i32
    %c0_i32_1 = arith.constant 0 : i32
    return %2, %c0_i32_0 : i32, i32
  }
  func.func @transform_3(%arg0: i32, %arg1: i32) -> (i32, i32) {
    %c0_i32 = arith.constant 0 : i32
    %c0_i32_0 = arith.constant 0 : i32
    return %arg0, %c0_i32 : i32, i32
  }
}

</mosaic_0001>

<llo_original>
// kernel: tpu_custom_call.1
$region0: #{tpu_custom_call.1}
  #allocation0 [shape = 'u32[]', space=smem, size = 0x4, offset = 0x4, fixed_abs, tag = 'smem constant byte address 0x4 - core index']
  #allocation1 [shape = 'u32[72,128]{1,0:T(1,128)}', space=vmem, size = 0x9000, scoped, tag = 'internal scratch']
  #allocation2 [shape = 'f32[1]{0:T(128)S(6)}', space=smem, size = 0x200, scoped, tag = 'scoped memory for tpu_custom_call.1']
  %s0 = inlined_call_operand.<no memory space> [shape: f32[1], index: 0, kind: input, shape index: {}]
  %s1 = inlined_call_operand.hbm [shape: f32[8,32], index: 1, kind: input, shape index: {}]
  %s2 = inlined_call_operand.hbm [shape: f32[8,32], index: 2, kind: input, shape index: {}]
  %s3 = inlined_call_operand.hbm [shape: f32[8,128], index: 3, kind: output, shape index: {}]
  %s4 = sld [smem:[#allocation0]]
  $region42: #{tpu_custom_call.1} parent=0
    _
  %s6 = ssub.s32 1, %s4
  %s7 = scalar_select 0, %s6, %s4
  %8 = sst [smem:[#allocation2]] %s0
  $region1: #{tpu_custom_call.1} parent=0
    #allocation3 [shape = 'u8[4096]{0}', space=vmem, size = 0x1000, scoped, tag = 'input window, operand 1, single buffered']
    #allocation4 [shape = 's32[1]{0}', space=sflag, size = 0x4, scoped, tag = 'scoped memory for tpu_custom_call.1']
    #allocation5 [shape = 's32[1]{0}', space=sflag, size = 0x4, scoped, tag = 'scoped memory for tpu_custom_call.1']
    #allocation6 [shape = 'u8[4096]{0}', space=vmem, size = 0x1000, scoped, tag = 'input window, operand 2, single buffered']
    #allocation7 [shape = 's32[1]{0}', space=sflag, size = 0x4, scoped, tag = 'scoped memory for tpu_custom_call.1']
    #allocation8 [shape = 'u8[4096]{0}', space=vmem, size = 0x1000, scoped, tag = 'output window, operand 0, single buffered']
    %9 = vsyncpa [#allocation4], 0
    %10 = vsyncpa [#allocation7], 0
    %11 = vsyncpa [#allocation5], 0
    // Predicated region
    $region2: #{tpu_custom_call.1} parent=1 // pred_check
      _
    $region3: #{tpu_custom_call.1} parent=1 // pred_check_branch
      %13 = sbr.rel (0) target = $region5
    $region4: #{tpu_custom_call.1} parent=1 // pred_region
      _
    $region5: #{tpu_custom_call.1} parent=1 // pred_fallthru
      _
    // Predicated region
    $region6: #{tpu_custom_call.1} parent=1 // pred_check
      _
    $region7: #{tpu_custom_call.1} parent=1 // pred_check_branch
      %15 = sbr.rel (0) target = $region9
    $region8: #{tpu_custom_call.1} parent=1 // pred_region
      %s16 = sadd.s32 0, 0
      %p17 = scmp.lt.s32.totalorder %s16, 0
      %s18 = scalar_select %p17, %s16, 0
      %20 = vsyncadd [#allocation4], 0
      %s21 = smul.addr %s18, 8
      %s22 = scalar_lea.hbm %s1, %s21
      %s24 = sshll.u32 %s22, 4
      %s25 = int_to_ptr.hbm [resolvable:$true] %s24
      %s26 = sshll.u32 [#allocation3], 4
      %s27 = int_to_ptr.vmem [resolvable:$true] %s26
      %29 = dma.hbm_to_vmem [thread:$0]  %s25, 128, %s27, [#allocation4]
    $region9: #{tpu_custom_call.1} parent=1 // pred_fallthru
      _
    // Predicated region
    $region10: #{tpu_custom_call.1} parent=1 // pred_check
      _
    $region11: #{tpu_custom_call.1} parent=1 // pred_check_branch
      %31 = sbr.rel (0) target = $region13
    $region12: #{tpu_custom_call.1} parent=1 // pred_region
      %s32 = sadd.s32 0, 0
      %p33 = scmp.lt.s32.totalorder %s32, 0
      %s34 = scalar_select %p33, %s32, 0
      %36 = vsyncadd [#allocation7], 0
      %s37 = smul.addr %s34, 8
      %s38 = scalar_lea.hbm %s2, %s37
      %s40 = sshll.u32 %s38, 4
      %s41 = int_to_ptr.hbm [resolvable:$true] %s40
      %s42 = sshll.u32 [#allocation6], 4
      %s43 = int_to_ptr.vmem [resolvable:$true] %s42
      %45 = dma.hbm_to_vmem [thread:$0]  %s41, 128, %s43, [#allocation7]
    $region13: #{tpu_custom_call.1} parent=1 // pred_fallthru
      _
    // Predicated region
    $region14: #{tpu_custom_call.1} parent=1 // pred_check
      _
    $region15: #{tpu_custom_call.1} parent=1 // pred_check_branch
      %47 = sbr.rel (0) target = $region17
    $region16: #{tpu_custom_call.1} parent=1 // pred_region
      %49 = dma.done [#allocation4], 128
    $region17: #{tpu_custom_call.1} parent=1 // pred_fallthru
      _
    // Predicated region
    $region18: #{tpu_custom_call.1} parent=1 // pred_check
      _
    $region19: #{tpu_custom_call.1} parent=1 // pred_check_branch
      %51 = sbr.rel (0) target = $region21
    $region20: #{tpu_custom_call.1} parent=1 // pred_region
      %53 = dma.done [#allocation7], 128
    $region21: #{tpu_custom_call.1} parent=1 // pred_fallthru
      _
    %s54 = sadd.s32 0, 0
    %p55 = scmp.lt.s32.totalorder %s54, 0
    %s56 = scalar_select %p55, %s54, 0
    %s57 = sadd.s32 0, 0
    %p58 = scmp.lt.s32.totalorder %s57, 0
    %s59 = scalar_select %p58, %s57, 0
    %p60 = scmp.eq.s32.totalorder 0, 0
    // Predicated region
    $region22: #{tpu_custom_call.1} parent=1 // pred_check
      %p61 = pneg %p60
    $region23: #{tpu_custom_call.1} parent=1 // pred_check_branch
      %63 = sbr.rel (%p61) target = $region25
    $region24: #{tpu_custom_call.1} parent=1 // pred_region
      %64 = vst [vmem:[#allocation8] sm:$0xff] 0.0
    $region25: #{tpu_custom_call.1} parent=1 // pred_fallthru
      _
    %s65 = sld [smem:[#allocation2]]
    %v66 = vld [vmem:[#allocation3] sm:$0xff]
    %v67 = vld [vmem:[#allocation6] sm:$0xff]
    %v68 = vmul.f32 %v66, %v66
    %vm69 = vcmask 261120
    %v70 = vsel %vm69, %v68, 0.0
    %71 = vadd.xlane.f32.xlu0 %v70
    %v72 = vpop.xlane.xlu0 %71
    %v73 = vrsqrt.pop %v72
    %v74 = vmul.f32 %v73, %v72
    %v75 = vmul.f32 %v74, %v73
    %v76 = vmul.f32 0.5, %v75
    %v77 = vsub.f32 1.5, %v76
    %v78 = vmul.f32 %v73, %v77
    %v79 = vmul.f32 %v72, %v78
    %vm80 = vcmp.eq.f32.partialorder %v72, inf
    %v81 = vsel %vm80, %v72, %v79
    %vm82 = vcmp.eq.f32.partialorder %v72, 0.0
    %v83 = vand.u32 %v72, 2147483648
    %v84 = vsel %vm82, %v83, %v81
    %v85 = vmul.f32 %v67, %v67
    %v86 = vsel %vm69, %v85, 0.0
    %87 = vadd.xlane.f32.xlu0 %v86
    %v88 = vpop.xlane.xlu0 %87
    %v89 = vrsqrt.pop %v88
    %v90 = vmul.f32 %v89, %v88
    %v91 = vmul.f32 %v90, %v89
    %v92 = vmul.f32 0.5, %v91
    %v93 = vsub.f32 1.5, %v92
    %v94 = vmul.f32 %v89, %v93
    %v95 = vmul.f32 %v88, %v94
    %vm96 = vcmp.eq.f32.partialorder %v88, inf
    %v97 = vsel %vm96, %v88, %v95
    %vm98 = vcmp.eq.f32.partialorder %v88, 0.0
    %v99 = vand.u32 %v88, 2147483648
    %v100 = vsel %vm98, %v99, %v97
    %v101 = vsub.f32 %v84, %v100
    %v102 = vstv %s65
    %v103 = vadd.f32 %v101, %v102
    %v104 = vmax.f32 %v103, 0.0
    %s105 = sadd.s32 0, 0
    %s106 = smul.u32 %s105, 8
    %s107 = sadd.s32 %s106, 8
    %p108 = scmp.le.s32.totalorder %s107, 8
    // Predicated region
    $region26: #{tpu_custom_call.1} parent=1 // pred_check
      %p109 = pneg %p108
    $region27: #{tpu_custom_call.1} parent=1 // pred_check_branch
      %111 = sbr.rel (%p109) target = $region29
    $region28: #{tpu_custom_call.1} parent=1 // pred_region
      %v112 = vld [vmem:[#allocation8] sm:$0xff]
      %vm113 = vcmask 7168
      %v114 = vsel %vm113, %v104, 0.0
      %115 = vadd.xlane.f32.xlu0 %v114
      %v116 = vpop.xlane.xlu0 %115
      %v117 = vrot.slane %v116, 4
      %v118 = vadd.f32 %v116, %v117
      %v119 = vrot.slane %v118, 2
      %v120 = vadd.f32 %v118, %v119
      %v121 = vrot.slane %v120, 1
      %v122 = vadd.f32 %v120, %v121
      %s123 = vtos %v122
      %v124 = vstv %s123
      %v125 = vadd.f32 %v112, %v124
      %126 = vst [vmem:[#allocation8] sm:$0xff] %v125
    $region29: #{tpu_custom_call.1} parent=1 // pred_fallthru
      _
    %p127 = scmp.gt.s32.totalorder %s107, 8
    // Predicated region
    $region30: #{tpu_custom_call.1} parent=1 // pred_check
      %p128 = pneg %p127
    $region31: #{tpu_custom_call.1} parent=1 // pred_check_branch
      %130 = sbr.rel (%p128) target = $region33
    $region32: #{tpu_custom_call.1} parent=1 // pred_region
      %v131 = vlaneseq
      %v132 = vshrl.u32 %v131, 7
      %v133 = vstv %s106
      %v134 = vadd.s32 %v133, %v132
      %vm135 = vcmp.lt.s32.totalorder %v134, 8
      %v136 = vsel %vm135, %v104, 0.0
      %v137 = vld [vmem:[#allocation8] sm:$0xff]
      %vm138 = vcmask 7168
      %v139 = vsel %vm138, %v136, 0.0
      %140 = vadd.xlane.f32.xlu0 %v139
      %v141 = vpop.xlane.xlu0 %140
      %v142 = vrot.slane %v141, 4
      %v143 = vadd.f32 %v141, %v142
      %v144 = vrot.slane %v143, 2
      %v145 = vadd.f32 %v143, %v144
      %v146 = vrot.slane %v145, 1
      %v147 = vadd.f32 %v145, %v146
      %s148 = vtos %v147
      %v149 = vstv %s148
      %v150 = vadd.f32 %v137, %v149
      %151 = vst [vmem:[#allocation8] sm:$0xff] %v150
    $region33: #{tpu_custom_call.1} parent=1 // pred_fallthru
      _
    // Predicated region
    $region34: #{tpu_custom_call.1} parent=1 // pred_check
      _
    $region35: #{tpu_custom_call.1} parent=1 // pred_check_branch
      %153 = sbr.rel (0) target = $region37
    $region36: #{tpu_custom_call.1} parent=1 // pred_region
      %155 = vsyncadd [#allocation5], 0
      %s157 = sshll.u32 [#allocation8], 4
      %s158 = int_to_ptr.vmem [resolvable:$true] %s157
      %s159 = sshll.u32 %s3, 4
      %s160 = int_to_ptr.hbm [resolvable:$true] %s159
      %162 = dma.vmem_to_hbm [thread:$0]  %s158, 128, %s160, [#allocation5]
    $region37: #{tpu_custom_call.1} parent=1 // pred_fallthru
      _
    // Predicated region
    $region38: #{tpu_custom_call.1} parent=1 // pred_check
      _
    $region39: #{tpu_custom_call.1} parent=1 // pred_check_branch
      %164 = sbr.rel (0) target = $region41
    $region40: #{tpu_custom_call.1} parent=1 // pred_region
      %166 = dma.done [#allocation5], 128
    $region41: #{tpu_custom_call.1} parent=1 // pred_fallthru
      _
    %167 = vsyncpa [#allocation4], 1
    %168 = vsyncpa [#allocation7], 1
    %169 = vsyncpa [#allocation5], 1

</llo_original>
